<compile_context>
chip_gen: v6e
topology: v6e:2x2x1
jax: 0.10.0
libtpu: 0.0.40
codegen_flags: <defaults>
</compile_context>

<pallas_src>
import functools

import jax
import jax.numpy as jnp
from jax import lax
from jax.experimental import pallas as pl
from jax.experimental.pallas import tpu as pltpu


# ----------------------------- kernels ------------------------------------


def _mlp_body(x, w1_ref, b1_ref, w2_ref, b2_ref, w3_ref, b3_ref):
    """relu(linear1) -> relu(linear2) -> linear3, f32 accumulation / epilogue."""
    h = jnp.dot(x.astype(jnp.bfloat16), w1_ref[...],
                preferred_element_type=jnp.float32) + b1_ref[...]
    h = jnp.maximum(h, 0.0)
    h = jnp.dot(h.astype(jnp.bfloat16), w2_ref[...],
                preferred_element_type=jnp.float32) + b2_ref[...]
    h = jnp.maximum(h, 0.0)
    return jnp.dot(h.astype(jnp.bfloat16), w3_ref[...],
                   preferred_element_type=jnp.float32) + b3_ref[...]


def _regression_kernel(x_ref, w1_ref, b1_ref, w2_ref, b2_ref, w3_ref, b3_ref,
                       o_ref):
    """Regression mode: just the 3-layer MLP on the current query tile."""
    o = _mlp_body(x_ref[...], w1_ref, b1_ref, w2_ref, b2_ref, w3_ref, b3_ref)
    o_ref[...] = o.astype(o_ref.dtype)


def _cos_sim_kernel(x_ref, tf_ref, w1_ref, b1_ref, w2_ref, b2_ref, w3_ref,
                    b3_ref, o_ref, *, eps):
    """cos_sim mode, fully fused: MLP on queries + MLP on train_feat + pairwise
    cosine similarity, all with the weights resident in VMEM."""
    a = _mlp_body(x_ref[...], w1_ref, b1_ref, w2_ref, b2_ref, w3_ref, b3_ref)   # (tq, D)
    t = _mlp_body(tf_ref[...], w1_ref, b1_ref, w2_ref, b2_ref, w3_ref, b3_ref)  # (K, D)

    # Pairwise dot products: contract on the feature axis (no explicit t.T).
    num = lax.dot_general(a, t, dimension_numbers=(((1,), (1,)), ((), ())),
                          preferred_element_type=jnp.float32)                   # (tq, K)

    a_n2 = jnp.sum(a * a, axis=-1, keepdims=True)                               # (tq, 1)
    t_n2 = jnp.sum(t * t, axis=-1, keepdims=True)                               # (K, 1)
    # 1 / max(||a||*||t||, eps)  ==  rsqrt(max(||a||^2*||t||^2, eps^2))
    inv = lax.rsqrt(jnp.maximum(a_n2 * t_n2.T, eps * eps))                      # (tq, K)
    o_ref[...] = (num * inv).astype(o_ref.dtype)


# ----------------------------- wrappers ------------------------------------


def _round_up(n, m):
    return -(-n // m) * m


def _weight_specs(w1, b1, w2, b2, w3, b3):
    # Constant block index -> Pallas streams each weight from HBM exactly once
    # per call and keeps it resident in VMEM across all grid steps.
    return [
        pl.BlockSpec(w1.shape, lambda i: (0, 0)),
        pl.BlockSpec(b1.shape, lambda i: (0, 0)),
        pl.BlockSpec(w2.shape, lambda i: (0, 0)),
        pl.BlockSpec(b2.shape, lambda i: (0, 0)),
        pl.BlockSpec(w3.shape, lambda i: (0, 0)),
        pl.BlockSpec(b3.shape, lambda i: (0, 0)),
    ]


def _nbytes(*arrays):
    return sum(int(a.size) * a.dtype.itemsize for a in arrays)


def analogy_pred_forward(inp, train_feat, params, *, mode="regression",
                         num_basis=10, q_tile=128):
    """JAX/Pallas equivalent of AnalogyPred.forward(input, train_feat)."""
    (w1, b1), (w2, b2), (w3, b3) = params
    B, in_dim = inp.shape
    out_dim = w3.shape[1]

    # Query-row tiling: single whole-array tile for small batches, otherwise a
    # grid of q_tile-row tiles (weights stay resident -> stream amortized).
    if B <= q_tile:
        b_pad = _round_up(B, 8)
        tq = b_pad
    else:
        b_pad = _round_up(B, q_tile)
        tq = q_tile
    x = inp if b_pad == B else jnp.pad(inp, ((0, b_pad - B), (0, 0)))
    n_tiles = b_pad // tq

    x_spec = pl.BlockSpec((tq, in_dim), lambda i: (i, 0))
    w_specs = _weight_specs(w1, b1, w2, b2, w3, b3)
    cparams = pltpu.CompilerParams(dimension_semantics=("parallel",))

    mlp_flops_per_row = 2 * (w1.shape[0] * w1.shape[1]
                             + w2.shape[0] * w2.shape[1]
                             + w3.shape[0] * w3.shape[1])

    if mode != "cos_sim":
        cost = pl.CostEstimate(
            flops=b_pad * mlp_flops_per_row,
            transcendentals=0,
            bytes_accessed=_nbytes(x, w1, b1, w2, b2, w3, b3) + b_pad * out_dim * 4)
        out = pl.pallas_call(
            _regression_kernel,
            out_shape=jax.ShapeDtypeStruct((b_pad, out_dim), jnp.float32),
            grid=(n_tiles,),
            in_specs=[x_spec] + w_specs,
            out_specs=pl.BlockSpec((tq, out_dim), lambda i: (i, 0)),
            compiler_params=cparams,
            cost_estimate=cost,
        )(x, w1, b1, w2, b2, w3, b3)
        return out if b_pad == B else out[:B]

    # --- cos_sim -----------------------------------------------------------
    # torch does train_feat.squeeze(): accept (K, in_dim) or (1, K, in_dim).
    if train_feat.ndim > 2:
        train_feat = train_feat.reshape(train_feat.shape[-2], train_feat.shape[-1])
    K = train_feat.shape[0]

    tf_spec = pl.BlockSpec((K, in_dim), lambda i: (0, 0))  # resident, DMA'd once
    cost = pl.CostEstimate(
        flops=(b_pad + n_tiles * K) * mlp_flops_per_row + 2 * b_pad * K * out_dim,
        transcendentals=b_pad * K,
        bytes_accessed=_nbytes(x, train_feat, w1, b1, w2, b2, w3, b3) + b_pad * K * 4)

    kernel = functools.partial(_cos_sim_kernel, eps=1e-8)
    out = pl.pallas_call(
        kernel,
        out_shape=jax.ShapeDtypeStruct((b_pad, K), jnp.float32),
        grid=(n_tiles,),
        in_specs=[x_spec, tf_spec] + w_specs,
        out_specs=pl.BlockSpec((tq, K), lambda i: (i, 0)),
        compiler_params=cparams,
        cost_estimate=cost,
    )(x, train_feat, w1, b1, w2, b2, w3, b3)
    return out if b_pad == B else out[:B]


# ----------------------------- parameter init ------------------------------


def _init_linear(key, fan_in, fan_out):
    # Deterministic PyTorch-style init: U(-1/sqrt(fan_in), 1/sqrt(fan_in)).
    kw, kb = jax.random.split(key)
    bound = 1.0 / jnp.sqrt(jnp.float32(fan_in))
    w = jax.random.uniform(kw, (fan_in, fan_out), jnp.float32, -bound, bound)
    b = jax.random.uniform(kb, (1, fan_out), jnp.float32, -bound, bound)
    # Weights live in HBM as bf16 (halves weight DMA); biases stay f32.
    return w.astype(jnp.bfloat16), b


def init_params(key, input_dim, hidden_dims):
    k1, k2, k3 = jax.random.split(key, 3)
    d1, d2, d3 = hidden_dims
    return [
        _init_linear(k1, input_dim, d1),
        _init_linear(k2, d1, d2),
        _init_linear(k3, d2, d3),
    ]


# ----------------------------- pure-JAX reference ---------------------------


def _reference_forward(inp, train_feat, params, mode):
    (w1, b1), (w2, b2), (w3, b3) = params

    def mlp(x):
        h = jnp.maximum(x @ w1.astype(jnp.float32) + b1, 0.0)
        h = jnp.maximum(h @ w2.astype(jnp.float32) + b2, 0.0)
        return h @ w3.astype(jnp.float32) + b3

    out = mlp(inp)
    if mode == "cos_sim":
        t = mlp(train_feat)
        num = out @ t.T
        a_n = jnp.linalg.norm(out, axis=-1, keepdims=True)
        t_n = jnp.linalg.norm(t, axis=-1, keepdims=True)
        return num / jnp.maximum(a_n * t_n.T, 1e-8)
    return out


# ----------------------------- main ----------------------------------------


if __name__ == "__main__":
    num_basis = 10
    batch = 8
    input_dim = 256  # USE_EMBED=True

    key = jax.random.PRNGKey(0)
    k_x, k_tf, k_reg, k_cos, k_big = jax.random.split(key, 5)

    x = jax.random.normal(k_x, (batch, input_dim), jnp.float32)
    # train_feat after .squeeze() in the reference: (num_basis, input_dim)
    train_feat = jax.random.normal(k_tf, (num_basis, input_dim), jnp.float32)

    # mode='regression': 256 -> 256 -> 128 -> num_basis
    reg_params = init_params(k_reg, input_dim, (256, 128, num_basis))
    out_reg = analogy_pred_forward(x, train_feat, reg_params,
                                   mode="regression", num_basis=num_basis)
    jax.block_until_ready(out_reg)
    assert out_reg.shape == (batch, num_basis), out_reg.shape
    ref_reg = _reference_forward(x, train_feat, reg_params, "regression")
    assert float(jnp.max(jnp.abs(out_reg - ref_reg))) < 5e-2

    # mode='cos_sim': 256 -> 512 -> 512 -> 512, then pairwise cosine similarity
    cos_params = init_params(k_cos, input_dim, (512, 512, 512))
    out_cos = analogy_pred_forward(x, train_feat, cos_params,
                                   mode="cos_sim", num_basis=num_basis)
    jax.block_until_ready(out_cos)
    assert out_cos.shape == (batch, num_basis), out_cos.shape
    assert bool(jnp.all(jnp.abs(out_cos) <= 1.0 + 1e-2))
    ref_cos = _reference_forward(x, train_feat, cos_params, "cos_sim")
    assert float(jnp.max(jnp.abs(out_cos - ref_cos))) < 3e-2

    # Multi-tile path: grid over query tiles with resident (once-streamed) weights.
    x_big = jax.random.normal(k_big, (24, input_dim), jnp.float32)
    out_big = analogy_pred_forward(x_big, train_feat, cos_params,
                                   mode="cos_sim", num_basis=num_basis, q_tile=8)
    jax.block_until_ready(out_big)
    assert out_big.shape == (24, num_basis), out_big.shape
    ref_big = _reference_forward(x_big, train_feat, cos_params, "cos_sim")
    assert float(jnp.max(jnp.abs(out_big - ref_big))) < 3e-2

    out_big_reg = analogy_pred_forward(x_big, train_feat, reg_params,
                                       mode="regression", num_basis=num_basis,
                                       q_tile=8)
    jax.block_until_ready(out_big_reg)
    ref_big_reg = _reference_forward(x_big, train_feat, reg_params, "regression")
    assert float(jnp.max(jnp.abs(out_big_reg - ref_big_reg))) < 5e-2

    print("KERNEL_OK")
</pallas_src>

<mosaic_0001>
module attributes {stable_mosaic.version = 11 : i64} {
  func.func @_regression_kernel(%arg0: i32, %arg1: memref<8x256xf32, #tpu.memory_space<vmem>>, %arg2: memref<256x256xbf16, #tpu.memory_space<vmem>>, %arg3: memref<1x256xf32, #tpu.memory_space<vmem>>, %arg4: memref<256x128xbf16, #tpu.memory_space<vmem>>, %arg5: memref<1x128xf32, #tpu.memory_space<vmem>>, %arg6: memref<128x10xbf16, #tpu.memory_space<vmem>>, %arg7: memref<1x10xf32, #tpu.memory_space<vmem>>, %arg8: memref<8x10xf32, #tpu.memory_space<vmem>>) attributes {dimension_semantics = [#tpu.dimension_semantics<parallel>], iteration_bounds = array<i64: 1>, scalar_prefetch = 0 : i64, scratch_operands = 0 : i64, tpu.core_type = #tpu.core_type<tc>, window_params = [{transform_indices = @transform_0, window_bounds = array<i64: 8, 256>}, {pipeline_mode = #tpu.pipeline_mode<synchronous>, transform_indices = @transform_1, window_bounds = array<i64: 256, 256>}, {pipeline_mode = #tpu.pipeline_mode<synchronous>, transform_indices = @transform_2, window_bounds = array<i64: 1, 256>}, {pipeline_mode = #tpu.pipeline_mode<synchronous>, transform_indices = @transform_3, window_bounds = array<i64: 256, 128>}, {pipeline_mode = #tpu.pipeline_mode<synchronous>, transform_indices = @transform_4, window_bounds = array<i64: 1, 128>}, {pipeline_mode = #tpu.pipeline_mode<synchronous>, transform_indices = @transform_5, window_bounds = array<i64: 128, 10>}, {pipeline_mode = #tpu.pipeline_mode<synchronous>, transform_indices = @transform_6, window_bounds = array<i64: 1, 10>}, {transform_indices = @transform_7, window_bounds = array<i64: 8, 10>}]} {
    %c0 = arith.constant 0 : index
    %c0_0 = arith.constant 0 : index
    %0 = vector.load %arg1[%c0, %c0_0] : memref<8x256xf32, #tpu.memory_space<vmem>>, vector<8x256xf32>
    %1 = arith.truncf %0 : vector<8x256xf32> to vector<8x256xbf16>
    %c0_1 = arith.constant 0 : index
    %c0_2 = arith.constant 0 : index
    %2 = vector.load %arg2[%c0_1, %c0_2] : memref<256x256xbf16, #tpu.memory_space<vmem>>, vector<256x256xbf16>
    %cst = arith.constant dense<0.000000e+00> : vector<8x256xf32>
    %3 = tpu.matmul %1, %2, %cst {dimension_numbers = #tpu.dot_dimension_numbers<[1], [0], [0], [1], [0, 0, 1, 1], [], []>} : vector<8x256xbf16>, vector<256x256xbf16>, vector<8x256xf32> -> vector<8x256xf32>
    %c0_3 = arith.constant 0 : index
    %c0_4 = arith.constant 0 : index
    %4 = vector.load %arg3[%c0_3, %c0_4] : memref<1x256xf32, #tpu.memory_space<vmem>>, vector<1x256xf32>
    %5 = vector.broadcast %4 : vector<1x256xf32> to vector<8x256xf32>
    %6 = arith.addf %3, %5 : vector<8x256xf32>
    %cst_5 = arith.constant 0.000000e+00 : f32
    %7 = vector.broadcast %cst_5 : f32 to vector<8x256xf32>
    %8 = arith.maximumf %6, %7 : vector<8x256xf32>
    %9 = arith.truncf %8 : vector<8x256xf32> to vector<8x256xbf16>
    %c0_6 = arith.constant 0 : index
    %c0_7 = arith.constant 0 : index
    %10 = vector.load %arg4[%c0_6, %c0_7] : memref<256x128xbf16, #tpu.memory_space<vmem>>, vector<256x128xbf16>
    %cst_8 = arith.constant dense<0.000000e+00> : vector<8x128xf32>
    %11 = tpu.matmul %9, %10, %cst_8 {dimension_numbers = #tpu.dot_dimension_numbers<[1], [0], [0], [1], [0, 0, 1, 1], [], []>} : vector<8x256xbf16>, vector<256x128xbf16>, vector<8x128xf32> -> vector<8x128xf32>
    %c0_9 = arith.constant 0 : index
    %c0_10 = arith.constant 0 : index
    %12 = vector.load %arg5[%c0_9, %c0_10] : memref<1x128xf32, #tpu.memory_space<vmem>>, vector<1x128xf32>
    %13 = vector.broadcast %12 : vector<1x128xf32> to vector<8x128xf32>
    %14 = arith.addf %11, %13 : vector<8x128xf32>
    %cst_11 = arith.constant 0.000000e+00 : f32
    %15 = vector.broadcast %cst_11 : f32 to vector<8x128xf32>
    %16 = arith.maximumf %14, %15 : vector<8x128xf32>
    %17 = arith.truncf %16 : vector<8x128xf32> to vector<8x128xbf16>
    %c0_12 = arith.constant 0 : index
    %c0_13 = arith.constant 0 : index
    %18 = vector.load %arg6[%c0_12, %c0_13] : memref<128x10xbf16, #tpu.memory_space<vmem>>, vector<128x10xbf16>
    %cst_14 = arith.constant dense<0.000000e+00> : vector<8x10xf32>
    %19 = tpu.matmul %17, %18, %cst_14 {dimension_numbers = #tpu.dot_dimension_numbers<[1], [0], [0], [1], [0, 0, 1, 1], [], []>} : vector<8x128xbf16>, vector<128x10xbf16>, vector<8x10xf32> -> vector<8x10xf32>
    %c0_15 = arith.constant 0 : index
    %c0_16 = arith.constant 0 : index
    %20 = vector.load %arg7[%c0_15, %c0_16] : memref<1x10xf32, #tpu.memory_space<vmem>>, vector<1x10xf32>
    %21 = vector.broadcast %20 : vector<1x10xf32> to vector<8x10xf32>
    %22 = arith.addf %19, %21 : vector<8x10xf32>
    %c0_17 = arith.constant 0 : index
    %c0_18 = arith.constant 0 : index
    %23 = vector.load %arg8[%c0_17, %c0_18] : memref<8x10xf32, #tpu.memory_space<vmem>>, vector<8x10xf32>
    tpu.vector_store %arg8[%c0_17, %c0_18], %22 {strides = array<i32>} : memref<8x10xf32, #tpu.memory_space<vmem>>, vector<8x10xf32>,
    return
  }
  func.func @transform_0(%arg0: i32) -> (i32, i32) {
    %c0_i32 = arith.constant 0 : i32
    %c0_i32_0 = arith.constant 0 : i32
    return %arg0, %c0_i32 : i32, i32
  }
  func.func @transform_1(%arg0: i32) -> (i32, i32) {
    %c0_i32 = arith.constant 0 : i32
    %c0_i32_0 = arith.constant 0 : i32
    %c0_i32_1 = arith.constant 0 : i32
    return %c0_i32, %c0_i32_0 : i32, i32
  }
  func.func @transform_2(%arg0: i32) -> (i32, i32) {
    %c0_i32 = arith.constant 0 : i32
    %c0_i32_0 = arith.constant 0 : i32
    %c0_i32_1 = arith.constant 0 : i32
    return %c0_i32, %c0_i32_0 : i32, i32
  }
  func.func @transform_3(%arg0: i32) -> (i32, i32) {
    %c0_i32 = arith.constant 0 : i32
    %c0_i32_0 = arith.constant 0 : i32
    %c0_i32_1 = arith.constant 0 : i32
    return %c0_i32, %c0_i32_0 : i32, i32
  }
  func.func @transform_4(%arg0: i32) -> (i32, i32) {
    %c0_i32 = arith.constant 0 : i32
    %c0_i32_0 = arith.constant 0 : i32
    %c0_i32_1 = arith.constant 0 : i32
    return %c0_i32, %c0_i32_0 : i32, i32
  }
  func.func @transform_5(%arg0: i32) -> (i32, i32) {
    %c0_i32 = arith.constant 0 : i32
    %c0_i32_0 = arith.constant 0 : i32
    %c0_i32_1 = arith.constant 0 : i32
    return %c0_i32, %c0_i32_0 : i32, i32
  }
  func.func @transform_6(%arg0: i32) -> (i32, i32) {
    %c0_i32 = arith.constant 0 : i32
    %c0_i32_0 = arith.constant 0 : i32
    %c0_i32_1 = arith.constant 0 : i32
    return %c0_i32, %c0_i32_0 : i32, i32
  }
  func.func @transform_7(%arg0: i32) -> (i32, i32) {
    %c0_i32 = arith.constant 0 : i32
    %c0_i32_0 = arith.constant 0 : i32
    return %arg0, %c0_i32 : i32, i32
  }
}

</mosaic_0001>

<llo_original>
// kernel: tpu_custom_call.1
$region0: #{tpu_custom_call.1}
  #allocation0 [shape = 'u32[]', space=smem, size = 0x4, offset = 0x4, fixed_abs, tag = 'smem constant byte address 0x4 - core index']
  #allocation1 [shape = 'u32[144,128]{1,0:T(1,128)}', space=vmem, size = 0x12000, scoped, tag = 'internal scratch']
  %s0 = inlined_call_operand.vmem [shape: f32[8,256], index: 0, kind: input, shape index: {}]
  %s1 = inlined_call_operand.hbm [shape: bf16[256,256], index: 1, kind: input, shape index: {}]
  %s2 = inlined_call_operand.vmem [shape: f32[1,256], index: 2, kind: input, shape index: {}]
  %s3 = inlined_call_operand.hbm [shape: bf16[256,128], index: 3, kind: input, shape index: {}]
  %s4 = inlined_call_operand.vmem [shape: f32[1,128], index: 4, kind: input, shape index: {}]
  %s5 = inlined_call_operand.vmem [shape: bf16[128,10], index: 5, kind: input, shape index: {}]
  %s6 = inlined_call_operand.vmem [shape: f32[1,10], index: 6, kind: input, shape index: {}]
  %s7 = inlined_call_operand.hbm [shape: f32[8,10], index: 7, kind: output, shape index: {}]
  %s8 = sld [smem:[#allocation0]]
  $region46: #{tpu_custom_call.1} parent=0
    _
  %s10 = ssub.s32 1, %s8
  %s11 = scalar_select 0, %s10, %s8
  $region1: #{tpu_custom_call.1} parent=0
    #allocation2 [shape = 'u8[131072]{0}', space=vmem, size = 0x20000, scoped, tag = 'input window, operand 1, single buffered']
    #allocation3 [shape = 's32[1]{0}', space=sflag, size = 0x4, scoped, tag = 'scoped memory for tpu_custom_call.1']
    #allocation4 [shape = 's32[1]{0}', space=sflag, size = 0x4, scoped, tag = 'scoped memory for tpu_custom_call.1']
    #allocation5 [shape = 'u8[65536]{0}', space=vmem, size = 0x10000, scoped, tag = 'input window, operand 3, single buffered']
    #allocation6 [shape = 's32[1]{0}', space=sflag, size = 0x4, scoped, tag = 'scoped memory for tpu_custom_call.1']
    #allocation7 [shape = 'u8[4096]{0}', space=vmem, size = 0x1000, scoped, tag = 'output window, operand 0, single buffered']
    %12 = vsyncpa [#allocation3], 0
    %13 = vsyncpa [#allocation6], 0
    %14 = vsyncpa [#allocation4], 0
    // Predicated region
    $region2: #{tpu_custom_call.1} parent=1 // pred_check
      _
    $region3: #{tpu_custom_call.1} parent=1 // pred_check_branch
      %16 = sbr.rel (0) target = $region5
    $region4: #{tpu_custom_call.1} parent=1 // pred_region
      _
    $region5: #{tpu_custom_call.1} parent=1 // pred_fallthru
      _
    // Predicated region
    $region6: #{tpu_custom_call.1} parent=1 // pred_check
      _
    $region7: #{tpu_custom_call.1} parent=1 // pred_check_branch
      %18 = sbr.rel (0) target = $region9
    $region8: #{tpu_custom_call.1} parent=1 // pred_region
      %s20 = ssub.s32 4096, 4096
      %21 = vsyncadd [#allocation3], %s20
      %s22 = sshll.u32 [#allocation2], 4
      %s23 = int_to_ptr.vmem [resolvable:$true] %s22
      %28 = dma.hbm_to_vmem [thread:$0]  %s1, 4096, %s23, [#allocation3], 128, 128, 8
    $region9: #{tpu_custom_call.1} parent=1 // pred_fallthru
      _
    // Predicated region
    $region10: #{tpu_custom_call.1} parent=1 // pred_check
      _
    $region11: #{tpu_custom_call.1} parent=1 // pred_check_branch
      %30 = sbr.rel (0) target = $region13
    $region12: #{tpu_custom_call.1} parent=1 // pred_region
      _
    $region13: #{tpu_custom_call.1} parent=1 // pred_fallthru
      _
    // Predicated region
    $region14: #{tpu_custom_call.1} parent=1 // pred_check
      _
    $region15: #{tpu_custom_call.1} parent=1 // pred_check_branch
      %32 = sbr.rel (0) target = $region17
    $region16: #{tpu_custom_call.1} parent=1 // pred_region
      %s34 = ssub.s32 2048, 2048
      %35 = vsyncadd [#allocation6], %s34
      %s36 = sshll.u32 [#allocation5], 4
      %s37 = int_to_ptr.vmem [resolvable:$true] %s36
      %42 = dma.hbm_to_vmem [thread:$0]  %s3, 2048, %s37, [#allocation6], 64, 64, 4
    $region17: #{tpu_custom_call.1} parent=1 // pred_fallthru
      _
    // Predicated region
    $region18: #{tpu_custom_call.1} parent=1 // pred_check
      _
    $region19: #{tpu_custom_call.1} parent=1 // pred_check_branch
      %44 = sbr.rel (0) target = $region21
    $region20: #{tpu_custom_call.1} parent=1 // pred_region
      _
    $region21: #{tpu_custom_call.1} parent=1 // pred_fallthru
      _
    // Predicated region
    $region22: #{tpu_custom_call.1} parent=1 // pred_check
      _
    $region23: #{tpu_custom_call.1} parent=1 // pred_check_branch
      %46 = sbr.rel (0) target = $region25
    $region24: #{tpu_custom_call.1} parent=1 // pred_region
      _
    $region25: #{tpu_custom_call.1} parent=1 // pred_fallthru
      _
    // Predicated region
    $region26: #{tpu_custom_call.1} parent=1 // pred_check
      _
    $region27: #{tpu_custom_call.1} parent=1 // pred_check_branch
      %48 = sbr.rel (0) target = $region29
    $region28: #{tpu_custom_call.1} parent=1 // pred_region
      _
    $region29: #{tpu_custom_call.1} parent=1 // pred_fallthru
      _
    // Predicated region
    $region30: #{tpu_custom_call.1} parent=1 // pred_check
      _
    $region31: #{tpu_custom_call.1} parent=1 // pred_check_branch
      %50 = sbr.rel (0) target = $region33
    $region32: #{tpu_custom_call.1} parent=1 // pred_region
      %51 = dma.done [#allocation3], 4096
    $region33: #{tpu_custom_call.1} parent=1 // pred_fallthru
      _
    // Predicated region
    $region34: #{tpu_custom_call.1} parent=1 // pred_check
      _
    $region35: #{tpu_custom_call.1} parent=1 // pred_check_branch
      %53 = sbr.rel (0) target = $region37
    $region36: #{tpu_custom_call.1} parent=1 // pred_region
      %54 = dma.done [#allocation6], 2048
    $region37: #{tpu_custom_call.1} parent=1 // pred_fallthru
      _
    %v56 = vld [vmem:[%s0] sm:$0xff]
    %v57 = vld [vmem:[%s0 + $0x8] sm:$0xff]
    %v58 = vpack.c.bf16 %v56, %v56
    %v59 = vpack.c.bf16 %v57, %v57
    %v60 = vld [vmem:[#allocation2] sm:$0xff]
    %v61 = vld [vmem:[#allocation2 + $0x8] sm:$0xff]
    %v62 = vld [vmem:[#allocation2 + $0x10] sm:$0xff]
    %v63 = vld [vmem:[#allocation2 + $0x18] sm:$0xff]
    %v64 = vld [vmem:[#allocation2 + $0x20] sm:$0xff]
    %v65 = vld [vmem:[#allocation2 + $0x28] sm:$0xff]
    %v66 = vld [vmem:[#allocation2 + $0x30] sm:$0xff]
    %v67 = vld [vmem:[#allocation2 + $0x38] sm:$0xff]
    %v68 = vld [vmem:[#allocation2 + $0x40] sm:$0xff]
    %v69 = vld [vmem:[#allocation2 + $0x48] sm:$0xff]
    %v70 = vld [vmem:[#allocation2 + $0x50] sm:$0xff]
    %v71 = vld [vmem:[#allocation2 + $0x58] sm:$0xff]
    %v72 = vld [vmem:[#allocation2 + $0x60] sm:$0xff]
    %v73 = vld [vmem:[#allocation2 + $0x68] sm:$0xff]
    %v74 = vld [vmem:[#allocation2 + $0x70] sm:$0xff]
    %v75 = vld [vmem:[#allocation2 + $0x78] sm:$0xff]
    %v76 = vld [vmem:[#allocation2 + $0x80] sm:$0xff]
    %v77 = vld [vmem:[#allocation2 + $0x88] sm:$0xff]
    %v78 = vld [vmem:[#allocation2 + $0x90] sm:$0xff]
    %v79 = vld [vmem:[#allocation2 + $0x98] sm:$0xff]
    %v80 = vld [vmem:[#allocation2 + $0xa0] sm:$0xff]
    %v81 = vld [vmem:[#allocation2 + $0xa8] sm:$0xff]
    %v82 = vld [vmem:[#allocation2 + $0xb0] sm:$0xff]
    %v83 = vld [vmem:[#allocation2 + $0xb8] sm:$0xff]
    %v84 = vld [vmem:[#allocation2 + $0xc0] sm:$0xff]
    %v85 = vld [vmem:[#allocation2 + $0xc8] sm:$0xff]
    %v86 = vld [vmem:[#allocation2 + $0xd0] sm:$0xff]
    %v87 = vld [vmem:[#allocation2 + $0xd8] sm:$0xff]
    %v88 = vld [vmem:[#allocation2 + $0xe0] sm:$0xff]
    %v89 = vld [vmem:[#allocation2 + $0xe8] sm:$0xff]
    %v90 = vld [vmem:[#allocation2 + $0xf0] sm:$0xff]
    %v91 = vld [vmem:[#allocation2 + $0xf8] sm:$0xff]
    %v92 = vld [vmem:[%s2] sm:$0x3]
    %v94 = vlaneseq
    %v95 = vshrl.u32 %v94, 7
    %v96 = vsub.s32 0, %v95
    %v97 = vrot.slane %v92, %v96
    %v98 = vlaneseq
    %v99 = vshrl.u32 %v98, 7
    %v100 = vsub.s32 1, %v99
    %v101 = vrot.slane %v92, %v100
    %v136 = vunpack.c.l.b16 %v60
    %v137 = vunpack.c.h.b16 %v60
    %v138 = vunpack.c.l.b16 %v61
    %v139 = vunpack.c.h.b16 %v61
    %v140 = vunpack.c.l.b16 %v62
    %v141 = vunpack.c.h.b16 %v62
    %v142 = vunpack.c.l.b16 %v63
    %v143 = vunpack.c.h.b16 %v63
    %v144 = vunpack.c.l.b16 %v64
    %v145 = vunpack.c.h.b16 %v64
    %v146 = vunpack.c.l.b16 %v65
    %v147 = vunpack.c.h.b16 %v65
    %v148 = vunpack.c.l.b16 %v66
    %v149 = vunpack.c.h.b16 %v66
    %v150 = vunpack.c.l.b16 %v67
    %v151 = vunpack.c.h.b16 %v67
    %v152 = vunpack.c.l.b16 %v68
    %v153 = vunpack.c.h.b16 %v68
    %v154 = vunpack.c.l.b16 %v69
    %v155 = vunpack.c.h.b16 %v69
    %v156 = vunpack.c.l.b16 %v70
    %v157 = vunpack.c.h.b16 %v70
    %v158 = vunpack.c.l.b16 %v71
    %v159 = vunpack.c.h.b16 %v71
    %v160 = vunpack.c.l.b16 %v72
    %v161 = vunpack.c.h.b16 %v72
    %v162 = vunpack.c.l.b16 %v73
    %v163 = vunpack.c.h.b16 %v73
    %v164 = vunpack.c.l.b16 %v74
    %v165 = vunpack.c.h.b16 %v74
    %v166 = vunpack.c.l.b16 %v75
    %v167 = vunpack.c.h.b16 %v75
    %v168 = vunpack.c.l.b16 %v76
    %v169 = vunpack.c.h.b16 %v76
    %v170 = vunpack.c.l.b16 %v77
    %v171 = vunpack.c.h.b16 %v77
    %v172 = vunpack.c.l.b16 %v78
    %v173 = vunpack.c.h.b16 %v78
    %v174 = vunpack.c.l.b16 %v79
    %v175 = vunpack.c.h.b16 %v79
    %v176 = vunpack.c.l.b16 %v80
    %v177 = vunpack.c.h.b16 %v80
    %v178 = vunpack.c.l.b16 %v81
    %v179 = vunpack.c.h.b16 %v81
    %v180 = vunpack.c.l.b16 %v82
    %v181 = vunpack.c.h.b16 %v82
    %v182 = vunpack.c.l.b16 %v83
    %v183 = vunpack.c.h.b16 %v83
    %v184 = vunpack.c.l.b16 %v84
    %v185 = vunpack.c.h.b16 %v84
    %v186 = vunpack.c.l.b16 %v85
    %v187 = vunpack.c.h.b16 %v85
    %v188 = vunpack.c.l.b16 %v86
    %v189 = vunpack.c.h.b16 %v86
    %v190 = vunpack.c.l.b16 %v87
    %v191 = vunpack.c.h.b16 %v87
    %v192 = vunpack.c.l.b16 %v88
    %v193 = vunpack.c.h.b16 %v88
    %v194 = vunpack.c.l.b16 %v89
    %v195 = vunpack.c.h.b16 %v89
    %v196 = vunpack.c.l.b16 %v90
    %v197 = vunpack.c.h.b16 %v90
    %v198 = vunpack.c.l.b16 %v91
    %v199 = vunpack.c.h.b16 %v91
    %v200 = vpack.c.b16 %v138, %v136
    %v201 = vpack.c.b16 %v139, %v137
    %v202 = vpack.c.b16 %v142, %v140
    %v203 = vpack.c.b16 %v143, %v141
    %v204 = vpack.c.b16 %v146, %v144
    %v205 = vpack.c.b16 %v147, %v145
    %v206 = vpack.c.b16 %v150, %v148
    %v207 = vpack.c.b16 %v151, %v149
    %v208 = vpack.c.b16 %v154, %v152
    %v209 = vpack.c.b16 %v155, %v153
    %v210 = vpack.c.b16 %v158, %v156
    %v211 = vpack.c.b16 %v159, %v157
    %v212 = vpack.c.b16 %v162, %v160
    %v213 = vpack.c.b16 %v163, %v161
    %v214 = vpack.c.b16 %v166, %v164
    %v215 = vpack.c.b16 %v167, %v165
    %v216 = vpack.c.b16 %v170, %v168
    %v217 = vpack.c.b16 %v171, %v169
    %v218 = vpack.c.b16 %v174, %v172
    %v219 = vpack.c.b16 %v175, %v173
    %v220 = vpack.c.b16 %v178, %v176
    %v221 = vpack.c.b16 %v179, %v177
    %v222 = vpack.c.b16 %v182, %v180
    %v223 = vpack.c.b16 %v183, %v181
    %v224 = vpack.c.b16 %v186, %v184
    %v225 = vpack.c.b16 %v187, %v185
    %v226 = vpack.c.b16 %v190, %v188
    %v227 = vpack.c.b16 %v191, %v189
    %v228 = vpack.c.b16 %v194, %v192
    %v229 = vpack.c.b16 %v195, %v193
    %v230 = vpack.c.b16 %v198, %v196
    %v231 = vpack.c.b16 %v199, %v197
    %264 = vmatprep.subr.bf16.mxu0 %v215
    %265 = vmatpush1.bf16.msra.mxu0 %v214
    %266 = vmatprep.subr.bf16.mxu0 %v213
    %267 = vmatpush1.bf16.msra.mxu0 %v212
    %268 = vmatprep.subr.bf16.mxu0 %v211
    %269 = vmatpush1.bf16.msra.mxu0 %v210
    %270 = vmatprep.subr.bf16.mxu0 %v209
    %271 = vmatpush1.bf16.msra.mxu0 %v208
    %272 = vmatprep.subr.bf16.mxu0 %v207
    %273 = vmatpush1.bf16.msra.mxu0 %v206
    %274 = vmatprep.subr.bf16.mxu0 %v205
    %275 = vmatpush1.bf16.msra.mxu0 %v204
    %276 = vmatprep.subr.bf16.mxu0 %v203
    %277 = vmatpush1.bf16.msra.mxu0 %v202
    %278 = vmatprep.subr.bf16.mxu0 %v201
    %279 = vmatpush1.bf16.msra.mxu0 %v200
    %280 = vmatprep.subr.bf16.mxu0 %v231
    %281 = vmatpush2.bf16.msra.mxu0 %v230
    %282 = vmatprep.subr.bf16.mxu0 %v229
    %283 = vmatpush2.bf16.msra.mxu0 %v228
    %284 = vmatprep.subr.bf16.mxu0 %v227
    %285 = vmatpush2.bf16.msra.mxu0 %v226
    %286 = vmatprep.subr.bf16.mxu0 %v225
    %287 = vmatpush2.bf16.msra.mxu0 %v224
    %288 = vmatprep.subr.bf16.mxu0 %v223
    %289 = vmatpush2.bf16.msra.mxu0 %v222
    %290 = vmatprep.subr.bf16.mxu0 %v221
    %291 = vmatpush2.bf16.msra.mxu0 %v220
    %292 = vmatprep.subr.bf16.mxu0 %v219
    %293 = vmatpush2.bf16.msra.mxu0 %v218
    %294 = vmatprep.subr.bf16.mxu0 %v217
    %295 = vmatpush2.bf16.msra.mxu0 %v216
    %296 = vmatprep.mubr.bf16.mxu0 %v59
    %297 = vmatmul.mubr.bf16.gmra.mxu0 %v58
    %v298 = vpop.f32.mrf.mxu0
    %v299 = vadd.f32 %v97, %v298
    %v300 = vpop.f32.mrf.mxu0
    %v301 = vadd.f32 %v101, %v300
    %v302 = vpop.f32.mrf.mxu0
    %v303 = vpop.f32.mrf.mxu0
    %304 = vdwg.mxu0
    %v305 = vmax.f32 %v299, 0.0
    %v306 = vmax.f32 %v301, 0.0
    %v307 = vpack.c.bf16 %v305, %v305
    %v308 = vpack.c.bf16 %v306, %v306
    %v309 = vld [vmem:[#allocation5] sm:$0xf]
    %v310 = vld [vmem:[#allocation5 + $0x4] sm:$0xf]
    %v311 = vld [vmem:[#allocation5 + $0x8] sm:$0xf]
    %v312 = vld [vmem:[#allocation5 + $0xc] sm:$0xf]
    %v313 = vld [vmem:[#allocation5 + $0x10] sm:$0xf]
    %v314 = vld [vmem:[#allocation5 + $0x14] sm:$0xf]
    %v315 = vld [vmem:[#allocation5 + $0x18] sm:$0xf]
    %v316 = vld [vmem:[#allocation5 + $0x1c] sm:$0xf]
    %v317 = vld [vmem:[#allocation5 + $0x20] sm:$0xf]
    %v318 = vld [vmem:[#allocation5 + $0x24] sm:$0xf]
    %v319 = vld [vmem:[#allocation5 + $0x28] sm:$0xf]
    %v320 = vld [vmem:[#allocation5 + $0x2c] sm:$0xf]
    %v321 = vld [vmem:[#allocation5 + $0x30] sm:$0xf]
    %v322 = vld [vmem:[#allocation5 + $0x34] sm:$0xf]
    %v323 = vld [vmem:[#allocation5 + $0x38] sm:$0xf]
    %v324 = vld [vmem:[#allocation5 + $0x3c] sm:$0xf]
    %v325 = vld [vmem:[#allocation5 + $0x40] sm:$0xf]
    %v326 = vld [vmem:[#allocation5 + $0x44] sm:$0xf]
    %v327 = vld [vmem:[#allocation5 + $0x48] sm:$0xf]
    %v328 = vld [vmem:[#allocation5 + $0x4c] sm:$0xf]
    %v329 = vld [vmem:[#allocation5 + $0x50] sm:$0xf]
    %v330 = vld [vmem:[#allocation5 + $0x54] sm:$0xf]
    %v331 = vld [vmem:[#allocation5 + $0x58] sm:$0xf]
    %v332 = vld [vmem:[#allocation5 + $0x5c] sm:$0xf]
    %v333 = vld [vmem:[#allocation5 + $0x60] sm:$0xf]
    %v334 = vld [vmem:[#allocation5 + $0x64] sm:$0xf]
    %v335 = vld [vmem:[#allocation5 + $0x68] sm:$0xf]
    %v336 = vld [vmem:[#allocation5 + $0x6c] sm:$0xf]
    %v337 = vld [vmem:[#allocation5 + $0x70] sm:$0xf]
    %v338 = vld [vmem:[#allocation5 + $0x74] sm:$0xf]
    %v339 = vld [vmem:[#allocation5 + $0x78] sm:$0xf]
    %v340 = vld [vmem:[#allocation5 + $0x7c] sm:$0xf]
    %v341 = vld [vmem:[%s4] sm:$0x1]
    %v343 = vlaneseq
    %v344 = vshrl.u32 %v343, 7
    %v345 = vsub.s32 0, %v344
    %v346 = vrot.slane %v341, %v345
    %v380 = vunpack.c.l.b16 %v309
    %v381 = vunpack.c.l.b16 %v310
    %v382 = vunpack.c.l.b16 %v311
    %v383 = vunpack.c.l.b16 %v312
    %v384 = vunpack.c.l.b16 %v313
    %v385 = vunpack.c.l.b16 %v314
    %v386 = vunpack.c.l.b16 %v315
    %v387 = vunpack.c.l.b16 %v316
    %v388 = vunpack.c.l.b16 %v317
    %v389 = vunpack.c.l.b16 %v318
    %v390 = vunpack.c.l.b16 %v319
    %v391 = vunpack.c.l.b16 %v320
    %v392 = vunpack.c.l.b16 %v321
    %v393 = vunpack.c.l.b16 %v322
    %v394 = vunpack.c.l.b16 %v323
    %v395 = vunpack.c.l.b16 %v324
    %v396 = vunpack.c.l.b16 %v325
    %v397 = vunpack.c.l.b16 %v326
    %v398 = vunpack.c.l.b16 %v327
    %v399 = vunpack.c.l.b16 %v328
    %v400 = vunpack.c.l.b16 %v329
    %v401 = vunpack.c.l.b16 %v330
    %v402 = vunpack.c.l.b16 %v331
    %v403 = vunpack.c.l.b16 %v332
    %v404 = vunpack.c.l.b16 %v333
    %v405 = vunpack.c.l.b16 %v334
    %v406 = vunpack.c.l.b16 %v335
    %v407 = vunpack.c.l.b16 %v336
    %v408 = vunpack.c.l.b16 %v337
    %v409 = vunpack.c.l.b16 %v338
    %v410 = vunpack.c.l.b16 %v339
    %v411 = vunpack.c.l.b16 %v340
    %v412 = vpack.c.b16 %v381, %v380
    %v413 = vpack.c.b16 %v383, %v382
    %v414 = vpack.c.b16 %v385, %v384
    %v415 = vpack.c.b16 %v387, %v386
    %v416 = vpack.c.b16 %v389, %v388
    %v417 = vpack.c.b16 %v391, %v390
    %v418 = vpack.c.b16 %v393, %v392
    %v419 = vpack.c.b16 %v395, %v394
    %v420 = vpack.c.b16 %v397, %v396
    %v421 = vpack.c.b16 %v399, %v398
    %v422 = vpack.c.b16 %v401, %v400
    %v423 = vpack.c.b16 %v403, %v402
    %v424 = vpack.c.b16 %v405, %v404
    %v425 = vpack.c.b16 %v407, %v406
    %v426 = vpack.c.b16 %v409, %v408
    %v427 = vpack.c.b16 %v411, %v410
    %444 = vmatprep.subr.bf16.mxu0 0
    %445 = vmatpush1.bf16.msra.mxu0 %v419
    %446 = vmatprep.subr.bf16.mxu0 0
    %447 = vmatpush1.bf16.msra.mxu0 %v418
    %448 = vmatprep.subr.bf16.mxu0 0
    %449 = vmatpush1.bf16.msra.mxu0 %v417
    %450 = vmatprep.subr.bf16.mxu0 0
    %451 = vmatpush1.bf16.msra.mxu0 %v416
    %452 = vmatprep.subr.bf16.mxu0 0
    %453 = vmatpush1.bf16.msra.mxu0 %v415
    %454 = vmatprep.subr.bf16.mxu0 0
    %455 = vmatpush1.bf16.msra.mxu0 %v414
    %456 = vmatprep.subr.bf16.mxu0 0
    %457 = vmatpush1.bf16.msra.mxu0 %v413
    %458 = vmatprep.subr.bf16.mxu0 0
    %459 = vmatpush1.bf16.msra.mxu0 %v412
    %460 = vmatprep.subr.bf16.mxu0 0
    %461 = vmatpush2.bf16.msra.mxu0 %v427
    %462 = vmatprep.subr.bf16.mxu0 0
    %463 = vmatpush2.bf16.msra.mxu0 %v426
    %464 = vmatprep.subr.bf16.mxu0 0
    %465 = vmatpush2.bf16.msra.mxu0 %v425
    %466 = vmatprep.subr.bf16.mxu0 0
    %467 = vmatpush2.bf16.msra.mxu0 %v424
    %468 = vmatprep.subr.bf16.mxu0 0
    %469 = vmatpush2.bf16.msra.mxu0 %v423
    %470 = vmatprep.subr.bf16.mxu0 0
    %471 = vmatpush2.bf16.msra.mxu0 %v422
    %472 = vmatprep.subr.bf16.mxu0 0
    %473 = vmatpush2.bf16.msra.mxu0 %v421
    %474 = vmatprep.subr.bf16.mxu0 0
    %475 = vmatpush2.bf16.msra.mxu0 %v420
    %476 = vmatprep.mubr.bf16.mxu0 %v308
    %477 = vmatmul.mubr.bf16.gmra.mxu0 %v307
    %v478 = vpop.f32.mrf.mxu0
    %v479 = vadd.f32 %v346, %v478
    %v480 = vpop.f32.mrf.mxu0
    %v481 = vpop.f32.mrf.mxu0
    %v482 = vpop.f32.mrf.mxu0
    %483 = vdwg.mxu0
    %v484 = vmax.f32 %v479, 0.0
    %v485 = vpack.c.bf16 %v484, %v484
    %v486 = vld [vmem:[%s5] sm:$0xf]
    %v487 = vld [vmem:[%s5 + $0x4] sm:$0xf]
    %v488 = vld [vmem:[%s5 + $0x8] sm:$0xf]
    %v489 = vld [vmem:[%s5 + $0xc] sm:$0xf]
    %v490 = vld [vmem:[%s5 + $0x10] sm:$0xf]
    %v491 = vld [vmem:[%s5 + $0x14] sm:$0xf]
    %v492 = vld [vmem:[%s5 + $0x18] sm:$0xf]
    %v493 = vld [vmem:[%s5 + $0x1c] sm:$0xf]
    %v494 = vld [vmem:[%s5 + $0x20] sm:$0xf]
    %v495 = vld [vmem:[%s5 + $0x24] sm:$0xf]
    %v496 = vld [vmem:[%s5 + $0x28] sm:$0xf]
    %v497 = vld [vmem:[%s5 + $0x2c] sm:$0xf]
    %v498 = vld [vmem:[%s5 + $0x30] sm:$0xf]
    %v499 = vld [vmem:[%s5 + $0x34] sm:$0xf]
    %v500 = vld [vmem:[%s5 + $0x38] sm:$0xf]
    %v501 = vld [vmem:[%s5 + $0x3c] sm:$0xf]
    %v502 = vld [vmem:[%s6] sm:$0x1]
    %v504 = vlaneseq
    %v505 = vshrl.u32 %v504, 7
    %v506 = vsub.s32 0, %v505
    %v507 = vrot.slane %v502, %v506
    %v525 = vunpack.c.l.b16 %v486
    %v526 = vunpack.c.l.b16 %v487
    %v527 = vunpack.c.l.b16 %v488
    %v528 = vunpack.c.l.b16 %v489
    %v529 = vunpack.c.l.b16 %v490
    %v530 = vunpack.c.l.b16 %v491
    %v531 = vunpack.c.l.b16 %v492
    %v532 = vunpack.c.l.b16 %v493
    %v533 = vunpack.c.l.b16 %v494
    %v534 = vunpack.c.l.b16 %v495
    %v535 = vunpack.c.l.b16 %v496
    %v536 = vunpack.c.l.b16 %v497
    %v537 = vunpack.c.l.b16 %v498
    %v538 = vunpack.c.l.b16 %v499
    %v539 = vunpack.c.l.b16 %v500
    %v540 = vunpack.c.l.b16 %v501
    %v541 = vpack.c.b16 %v526, %v525
    %v542 = vpack.c.b16 %v528, %v527
    %v543 = vpack.c.b16 %v530, %v529
    %v544 = vpack.c.b16 %v532, %v531
    %v545 = vpack.c.b16 %v534, %v533
    %v546 = vpack.c.b16 %v536, %v535
    %v547 = vpack.c.b16 %v538, %v537
    %v548 = vpack.c.b16 %v540, %v539
    %557 = vmatprep.subr.bf16.mxu0 0
    %558 = vmatpush1.bf16.msra.mxu0 %v548
    %559 = vmatprep.subr.bf16.mxu0 0
    %560 = vmatpush1.bf16.msra.mxu0 %v547
    %561 = vmatprep.subr.bf16.mxu0 0
    %562 = vmatpush1.bf16.msra.mxu0 %v546
    %563 = vmatprep.subr.bf16.mxu0 0
    %564 = vmatpush1.bf16.msra.mxu0 %v545
    %565 = vmatprep.subr.bf16.mxu0 0
    %566 = vmatpush1.bf16.msra.mxu0 %v544
    %567 = vmatprep.subr.bf16.mxu0 0
    %568 = vmatpush1.bf16.msra.mxu0 %v543
    %569 = vmatprep.subr.bf16.mxu0 0
    %570 = vmatpush1.bf16.msra.mxu0 %v542
    %571 = vmatprep.subr.bf16.mxu0 0
    %572 = vmatpush1.bf16.msra.mxu0 %v541
    %573 = vmatprep.subr.bf16.mxu0 0
    %574 = vmatpush2.bf16.msra.mxu0 0
    %575 = vmatprep.subr.bf16.mxu0 0
    %576 = vmatpush2.bf16.msra.mxu0 0
    %577 = vmatprep.subr.bf16.mxu0 0
    %578 = vmatpush2.bf16.msra.mxu0 0
    %579 = vmatprep.subr.bf16.mxu0 0
    %580 = vmatpush2.bf16.msra.mxu0 0
    %581 = vmatprep.subr.bf16.mxu0 0
    %582 = vmatpush2.bf16.msra.mxu0 0
    %583 = vmatprep.subr.bf16.mxu0 0
    %584 = vmatpush2.bf16.msra.mxu0 0
    %585 = vmatprep.subr.bf16.mxu0 0
    %586 = vmatpush2.bf16.msra.mxu0 0
    %587 = vmatprep.subr.bf16.mxu0 0
    %588 = vmatpush2.bf16.msra.mxu0 0
    %589 = vmatprep.mubr.bf16.mxu0 0
    %590 = vmatmul.mubr.bf16.gmra.mxu0 %v485
    %v591 = vpop.f32.mrf.mxu0
    %v592 = vadd.f32 %v507, %v591
    %v593 = vpop.f32.mrf.mxu0
    %v594 = vpop.f32.mrf.mxu0
    %v595 = vpop.f32.mrf.mxu0
    %596 = vdwg.mxu0
    %vm597 = vcmask 80896
    %598 = vst.msk [vmem:[#allocation7] sm:$0xff] %vm597, %v592
    // Predicated region
    $region38: #{tpu_custom_call.1} parent=1 // pred_check
      _
    $region39: #{tpu_custom_call.1} parent=1 // pred_check_branch
      %600 = sbr.rel (0) target = $region41
    $region40: #{tpu_custom_call.1} parent=1 // pred_region
      %s602 = ssub.s32 128, 128
      %603 = vsyncadd [#allocation4], %s602
      %s605 = sshll.u32 [#allocation7], 4
      %s606 = int_to_ptr.vmem [resolvable:$true] %s605
      %608 = dma.vmem_to_hbm [thread:$0]  %s606, 128, %s7, [#allocation4]
    $region41: #{tpu_custom_call.1} parent=1 // pred_fallthru
      _
    // Predicated region
    $region42: #{tpu_custom_call.1} parent=1 // pred_check
      _
    $region43: #{tpu_custom_call.1} parent=1 // pred_check_branch
      %610 = sbr.rel (0) target = $region45
    $region44: #{tpu_custom_call.1} parent=1 // pred_region
      %611 = dma.done [#allocation4], 128
    $region45: #{tpu_custom_call.1} parent=1 // pred_fallthru
      _
    %612 = vsyncpa [#allocation3], 1
    %613 = vsyncpa [#allocation6], 1
    %614 = vsyncpa [#allocation4], 1

</llo_original>
